<compile_context>
chip_gen: v7x
topology: tpu7x:2x2x1
jax: 0.10.0
libtpu: 0.0.40
codegen_flags: <defaults>
</compile_context>

<pallas_src>
import jax
import jax.numpy as jnp
from jax.experimental import pallas as pl
from jax.experimental.pallas import tpu as pltpu


def _round_up(x: int, m: int) -> int:
    return pl.cdiv(x, m) * m


def _pick_divisor_tile(dim: int, candidates=(512, 384, 256, 128)) -> int:
    """Largest candidate tile (multiple of 128) that divides dim, else dim."""
    for c in candidates:
        if dim % c == 0:
            return c
    return dim


def _chip_info():
    """Returns (is_v7x_like, vmem_limit_cap_bytes)."""
    try:
        kind = jax.devices()[0].device_kind.lower()
    except Exception:  # pragma: no cover
        kind = ""
    is_v7 = "v7" in kind
    try:
        phys_vmem = int(pltpu.get_tpu_info().vmem_capacity_bytes)
    except Exception:
        phys_vmem = (64 << 20) if is_v7 else (128 << 20)
    if phys_vmem <= (64 << 20):
        # Small-VMEM, 2-TensorCore generation: leave headroom, shard the grid.
        return True, 48 << 20
    # v5e / v6e: 128 MiB physical, single TC -> keep the biggest tiles that fit.
    return is_v7, 100 << 20


def _linear_kernel(x_ref, w_ref, b_ref, o_ref, acc_ref):
    # x_ref: (tm, tk)  f32   current batch/K tile
    # w_ref: (tk, tn)  bf16  W^T slab (pre-transposed & padded in the wrapper)
    # b_ref: (1,  tn)  f32
    # o_ref: (tm, tn)  f32
    # acc_ref: (tm, tn) f32 VMEM scratch accumulator
    k = pl.program_id(2)

    @pl.when(k == 0)
    def _init():
        acc_ref[...] = jnp.zeros_like(acc_ref)

    # bf16 MXU feed, f32 accumulate.
    x = x_ref[...].astype(w_ref.dtype)
    acc_ref[...] += jnp.dot(x, w_ref[...], preferred_element_type=jnp.float32)

    @pl.when(k == pl.num_programs(2) - 1)
    def _finalize():
        o_ref[...] = (acc_ref[...] + b_ref[...]).astype(o_ref.dtype)


def prepare_linear_params(weight, bias, compute_dtype=jnp.bfloat16):
    """One-time parameter prep (call once, cache the result).

    weight: (output_dim, input_dim) PyTorch layout
    bias:   (output_dim,)
    Returns (w_t, b2d, output_dim) where
      w_t: (input_dim, out_pad) compute_dtype  (transposed + lane-padded)
      b2d: (1, out_pad) float32                (lane-padded)
    """
    output_dim, input_dim = weight.shape
    out_pad = _round_up(output_dim, 128)
    if out_pad != output_dim:
        weight = jnp.pad(weight, ((0, out_pad - output_dim), (0, 0)))
        bias = jnp.pad(bias, (0, out_pad - output_dim))
    w_t = jnp.asarray(weight.T, dtype=compute_dtype)          # (input_dim, out_pad)
    b2d = jnp.asarray(bias, dtype=jnp.float32).reshape(1, out_pad)
    return w_t, b2d, output_dim


def linear_forward(x, w_t, b2d, output_dim, *, tm=None, tk=None, tn=None):
    """Pallas equivalent of nn.Linear forward using pre-prepared params.

    x:   (batch, input_dim) float32
    w_t: (input_dim, out_pad) bf16   from prepare_linear_params
    b2d: (1, out_pad) float32        from prepare_linear_params
    returns (batch, output_dim) float32 (x.dtype)
    """
    batch, input_dim = x.shape
    k_dim, out_pad = w_t.shape
    assert k_dim == input_dim, "weight/input dim mismatch"

    is_v7, vmem_cap = _chip_info()

    # ---- Tile selection ------------------------------------------------------
    # K/N tiles only when the dims are 128-multiples (exact division keeps the
    # reduction free of garbage-padding); otherwise use the full dim.
    if tk is None:
        tk = _pick_divisor_tile(input_dim)
    if tn is None:
        tn = _pick_divisor_tile(out_pad)
    n_tiles = out_pad // tn
    k_tiles = input_dim // tk

    if tm is None:
        tm = batch if batch < 8 else min(512, _round_up(batch, 8))
        # v7x: make sure the parallel axes produce >=2 grid steps so the work
        # shards across both TensorCores.  (v5e/v6e: single TC, keep tm big.)
        if is_v7 and n_tiles * pl.cdiv(batch, tm) < 2 and batch >= 16:
            tm = min(tm, _round_up(pl.cdiv(batch, 2), 8))
    m_tiles = pl.cdiv(batch, tm)

    # ---- VMEM budget (double-buffered x/W/out tiles + f32 accumulator) ------
    est = (2 * tm * tk * 4          # x tiles (f32 in HBM), double-buffered
           + 2 * tk * tn * 2        # W^T tiles (bf16), double-buffered
           + 2 * tm * tn * 4        # out tiles (f32), double-buffered
           + tm * tn * 4            # f32 accumulator scratch
           + 2 * tn * 4)            # bias
    vmem_limit = int(min(max(2 * est, 16 << 20), vmem_cap))

    out = pl.pallas_call(
        _linear_kernel,
        out_shape=jax.ShapeDtypeStruct((batch, out_pad), x.dtype),
        grid=(m_tiles, n_tiles, k_tiles),
        in_specs=[
            pl.BlockSpec((tm, tk), lambda i, j, k: (i, k)),   # x tile
            pl.BlockSpec((tk, tn), lambda i, j, k: (k, j)),   # W^T slab
            pl.BlockSpec((1, tn), lambda i, j, k: (0, j)),    # bias slab
        ],
        out_specs=pl.BlockSpec((tm, tn), lambda i, j, k: (i, j)),
        scratch_shapes=[pltpu.VMEM((tm, tn), jnp.float32)],
        compiler_params=pltpu.CompilerParams(
            dimension_semantics=("parallel", "parallel", "arbitrary"),
            vmem_limit_bytes=vmem_limit,
        ),
    )(x, w_t, b2d)

    # Only slice when output_dim needed lane padding (padded cols are exactly 0).
    if out_pad != output_dim:
        out = out[:, :output_dim]
    return out


if __name__ == "__main__":
    # Small shapes consistent with nn.Linear(input_dim, output_dim).
    batch, input_dim, output_dim = 8, 32, 16

    key = jax.random.PRNGKey(0)
    kx, kw, kb = jax.random.split(key, 3)

    x = jax.random.normal(kx, (batch, input_dim), dtype=jnp.float32)

    # Deterministic parameter init mimicking PyTorch nn.Linear default:
    # uniform(-1/sqrt(in_dim), 1/sqrt(in_dim))
    bound = 1.0 / (input_dim ** 0.5)
    weight = jax.random.uniform(kw, (output_dim, input_dim),
                                minval=-bound, maxval=bound, dtype=jnp.float32)
    bias = jax.random.uniform(kb, (output_dim,),
                              minval=-bound, maxval=bound, dtype=jnp.float32)

    # One-time parameter prep (pad + transpose + bf16 cast), then forward.
    w_t, b2d, out_dim = prepare_linear_params(weight, bias)
    out = linear_forward(x, w_t, b2d, out_dim)
    out = jax.block_until_ready(out)

    # Reference check in plain JAX (f32). bf16 MXU feed with f32 accumulate ->
    # slightly looser tolerance than pure-f32 nn.Linear numerics.
    ref = x @ weight.T + bias
    assert out.shape == (batch, output_dim)
    assert jnp.allclose(out, ref, atol=1e-2, rtol=1e-2), \
        float(jnp.max(jnp.abs(out - ref)))

    print("KERNEL_OK")
</pallas_src>

<mosaic_0001>
module attributes {stable_mosaic.version = 11 : i64} {
  func.func @_linear_kernel(%arg0: i32, %arg1: i32, %arg2: i32, %arg3: memref<8x32xf32, #tpu.memory_space<vmem>>, %arg4: memref<32x128xbf16, #tpu.memory_space<vmem>>, %arg5: memref<1x128xf32, #tpu.memory_space<vmem>>, %arg6: memref<8x128xf32, #tpu.memory_space<vmem>>, %arg7: memref<8x128xf32, #tpu.memory_space<vmem>>) attributes {dimension_semantics = [#tpu.dimension_semantics<parallel>, #tpu.dimension_semantics<parallel>, #tpu.dimension_semantics<arbitrary>], iteration_bounds = array<i64: 1, 1, 1>, scalar_prefetch = 0 : i64, scratch_operands = 1 : i64, tpu.core_type = #tpu.core_type<tc>, window_params = [{transform_indices = @transform_0, window_bounds = array<i64: 8, 32>}, {transform_indices = @transform_1, window_bounds = array<i64: 32, 128>}, {transform_indices = @transform_2, window_bounds = array<i64: 1, 128>}, {transform_indices = @transform_3, window_bounds = array<i64: 8, 128>}]} {
    %c0_i32 = arith.constant 0 : i32
    %0 = arith.cmpi eq, %arg2, %c0_i32 : i32
    %1 = arith.extui %0 : i1 to i32
    %c0_i32_0 = arith.constant 0 : i32
    %2 = arith.cmpi ne, %1, %c0_i32_0 : i32
    scf.if %2 {
      %cst_10 = arith.constant 0.000000e+00 : f32
      %13 = vector.broadcast %cst_10 : f32 to vector<8x128xf32>
      %c0_11 = arith.constant 0 : index
      %c0_12 = arith.constant 0 : index
      %14 = vector.load %arg7[%c0_11, %c0_12] : memref<8x128xf32, #tpu.memory_space<vmem>>, vector<8x128xf32>
      tpu.vector_store %arg7[%c0_11, %c0_12], %13 {strides = array<i32>} : memref<8x128xf32, #tpu.memory_space<vmem>>, vector<8x128xf32>,
    } else {
    }
    %c0 = arith.constant 0 : index
    %c0_1 = arith.constant 0 : index
    %3 = vector.load %arg3[%c0, %c0_1] : memref<8x32xf32, #tpu.memory_space<vmem>>, vector<8x32xf32>
    %4 = arith.truncf %3 : vector<8x32xf32> to vector<8x32xbf16>
    %c0_2 = arith.constant 0 : index
    %c0_3 = arith.constant 0 : index
    %5 = vector.load %arg7[%c0_2, %c0_3] : memref<8x128xf32, #tpu.memory_space<vmem>>, vector<8x128xf32>
    %c0_4 = arith.constant 0 : index
    %c0_5 = arith.constant 0 : index
    %6 = vector.load %arg4[%c0_4, %c0_5] : memref<32x128xbf16, #tpu.memory_space<vmem>>, vector<32x128xbf16>
    %cst = arith.constant dense<0.000000e+00> : vector<8x128xf32>
    %7 = tpu.matmul %4, %6, %cst {dimension_numbers = #tpu.dot_dimension_numbers<[1], [0], [0], [1], [0, 0, 1, 1], [], []>} : vector<8x32xbf16>, vector<32x128xbf16>, vector<8x128xf32> -> vector<8x128xf32>
    %8 = arith.addf %5, %7 : vector<8x128xf32>
    %c0_6 = arith.constant 0 : index
    %c0_7 = arith.constant 0 : index
    %9 = vector.load %arg7[%c0_6, %c0_7] : memref<8x128xf32, #tpu.memory_space<vmem>>, vector<8x128xf32>
    tpu.vector_store %arg7[%c0_6, %c0_7], %8 {strides = array<i32>} : memref<8x128xf32, #tpu.memory_space<vmem>>, vector<8x128xf32>,
    %c0_i32_8 = arith.constant 0 : i32
    %10 = arith.cmpi eq, %arg2, %c0_i32_8 : i32
    %11 = arith.extui %10 : i1 to i32
    %c0_i32_9 = arith.constant 0 : i32
    %12 = arith.cmpi ne, %11, %c0_i32_9 : i32
    scf.if %12 {
      %c0_10 = arith.constant 0 : index
      %c0_11 = arith.constant 0 : index
      %13 = vector.load %arg7[%c0_10, %c0_11] : memref<8x128xf32, #tpu.memory_space<vmem>>, vector<8x128xf32>
      %c0_12 = arith.constant 0 : index
      %c0_13 = arith.constant 0 : index
      %14 = vector.load %arg5[%c0_12, %c0_13] : memref<1x128xf32, #tpu.memory_space<vmem>>, vector<1x128xf32>
      %15 = vector.broadcast %14 : vector<1x128xf32> to vector<8x128xf32>
      %16 = arith.addf %13, %15 : vector<8x128xf32>
      %c0_14 = arith.constant 0 : index
      %c0_15 = arith.constant 0 : index
      %17 = vector.load %arg6[%c0_14, %c0_15] : memref<8x128xf32, #tpu.memory_space<vmem>>, vector<8x128xf32>
      tpu.vector_store %arg6[%c0_14, %c0_15], %16 {strides = array<i32>} : memref<8x128xf32, #tpu.memory_space<vmem>>, vector<8x128xf32>,
    } else {
    }
    return
  }
  func.func @transform_0(%arg0: i32, %arg1: i32, %arg2: i32) -> (i32, i32) {
    %c0_i32 = arith.constant 0 : i32
    return %arg0, %arg2 : i32, i32
  }
  func.func @transform_1(%arg0: i32, %arg1: i32, %arg2: i32) -> (i32, i32) {
    %c0_i32 = arith.constant 0 : i32
    return %arg2, %arg1 : i32, i32
  }
  func.func @transform_2(%arg0: i32, %arg1: i32, %arg2: i32) -> (i32, i32) {
    %c0_i32 = arith.constant 0 : i32
    %c0_i32_0 = arith.constant 0 : i32
    return %c0_i32, %arg1 : i32, i32
  }
  func.func @transform_3(%arg0: i32, %arg1: i32, %arg2: i32) -> (i32, i32) {
    %c0_i32 = arith.constant 0 : i32
    return %arg0, %arg1 : i32, i32
  }
}

</mosaic_0001>

<llo_original>
// kernel: tpu_custom_call.1
$region0: #{tpu_custom_call.1}
  #allocation0 [shape = 'u32[]', space=smem, size = 0x4, offset = 0x4, fixed_abs, tag = 'smem constant byte address 0x4 - core index']
  #allocation1 [shape = 'u32[144,128]{1,0:T(1,128)}', space=vmem, size = 0x12000, scoped, tag = 'internal scratch']
  #allocation2 [shape = 'f32[8,128]{1,0:T(8,128)}', space=vmem, size = 0x1000, scoped, tag = 'scratch operand']
  %s0 = inlined_call_operand.hbm [shape: f32[8,32], index: 0, kind: input, shape index: {}]
  %s1 = inlined_call_operand.hbm [shape: bf16[32,128], index: 1, kind: input, shape index: {}]
  %s2 = inlined_call_operand.vmem [shape: f32[1,128], index: 2, kind: input, shape index: {}]
  %s3 = inlined_call_operand.hbm [shape: f32[8,128], index: 3, kind: output, shape index: {}]
  %s4 = sld [smem:[#allocation0]]
  $region38: #{tpu_custom_call.1} parent=0
    _
  %s6 = ssub.s32 1, %s4
  %s7 = scalar_select 0, %s6, %s4
  $region1: #{tpu_custom_call.1} parent=0
    #allocation3 [shape = 'u8[4096]{0}', space=vmem, size = 0x1000, scoped, tag = 'input window, operand 0, single buffered']
    #allocation4 [shape = 's32[1]{0}', space=sflag, size = 0x4, scoped, tag = 'scoped memory for tpu_custom_call.1']
    #allocation5 [shape = 's32[1]{0}', space=sflag, size = 0x4, scoped, tag = 'scoped memory for tpu_custom_call.1']
    #allocation6 [shape = 'u8[8192]{0}', space=vmem, size = 0x2000, scoped, tag = 'input window, operand 1, single buffered']
    #allocation7 [shape = 's32[1]{0}', space=sflag, size = 0x4, scoped, tag = 'scoped memory for tpu_custom_call.1']
    #allocation8 [shape = 'u8[4096]{0}', space=vmem, size = 0x1000, scoped, tag = 'output window, operand 0, single buffered']
    %8 = vsyncpa [#allocation4], 0
    %9 = vsyncpa [#allocation7], 0
    %10 = vsyncpa [#allocation5], 0
    // Predicated region
    $region2: #{tpu_custom_call.1} parent=1 // pred_check
      _
    $region3: #{tpu_custom_call.1} parent=1 // pred_check_branch
      %12 = sbr.rel (0) target = $region5
    $region4: #{tpu_custom_call.1} parent=1 // pred_region
      %s14 = ssub.s32 128, 128
      %15 = vsyncadd [#allocation4], %s14
      %s17 = sshll.u32 [#allocation3], 4
      %s18 = int_to_ptr.vmem [resolvable:$true] %s17
      %20 = dma.hbm_to_vmem [thread:$0]  %s0, 128, %s18, [#allocation4]
    $region5: #{tpu_custom_call.1} parent=1 // pred_fallthru
      _
    // Predicated region
    $region6: #{tpu_custom_call.1} parent=1 // pred_check
      _
    $region7: #{tpu_custom_call.1} parent=1 // pred_check_branch
      %22 = sbr.rel (0) target = $region9
    $region8: #{tpu_custom_call.1} parent=1 // pred_region
      %s24 = ssub.s32 256, 256
      %25 = vsyncadd [#allocation7], %s24
      %s26 = sshll.u32 [#allocation6], 4
      %s27 = int_to_ptr.vmem [resolvable:$true] %s26
      %32 = dma.hbm_to_vmem [thread:$0]  %s1, 256, %s27, [#allocation7], 64, 64, 4
    $region9: #{tpu_custom_call.1} parent=1 // pred_fallthru
      _
    // Predicated region
    $region10: #{tpu_custom_call.1} parent=1 // pred_check
      _
    $region11: #{tpu_custom_call.1} parent=1 // pred_check_branch
      %34 = sbr.rel (0) target = $region13
    $region12: #{tpu_custom_call.1} parent=1 // pred_region
      _
    $region13: #{tpu_custom_call.1} parent=1 // pred_fallthru
      _
    // Predicated region
    $region14: #{tpu_custom_call.1} parent=1 // pred_check
      _
    $region15: #{tpu_custom_call.1} parent=1 // pred_check_branch
      %36 = sbr.rel (0) target = $region17
    $region16: #{tpu_custom_call.1} parent=1 // pred_region
      %37 = dma.done [#allocation4], 128
    $region17: #{tpu_custom_call.1} parent=1 // pred_fallthru
      _
    // Predicated region
    $region18: #{tpu_custom_call.1} parent=1 // pred_check
      _
    $region19: #{tpu_custom_call.1} parent=1 // pred_check_branch
      %39 = sbr.rel (0) target = $region21
    $region20: #{tpu_custom_call.1} parent=1 // pred_region
      %40 = dma.done [#allocation7], 256
    $region21: #{tpu_custom_call.1} parent=1 // pred_fallthru
      _
    %p42 = scmp.eq.s32.totalorder 0, 0
    // Predicated region
    $region22: #{tpu_custom_call.1} parent=1 // pred_check
      %p43 = pneg %p42
    $region23: #{tpu_custom_call.1} parent=1 // pred_check_branch
      %45 = sbr.rel (%p43) target = $region25
    $region24: #{tpu_custom_call.1} parent=1 // pred_region
      %46 = vst [vmem:[#allocation2] sm:$0xff] 0.0
    $region25: #{tpu_custom_call.1} parent=1 // pred_fallthru
      _
    %v47 = vld [vmem:[#allocation3] sm:$0xff]
    %v48 = vpack.c.bf16 %v47, %v47
    %v49 = vld [vmem:[#allocation2] sm:$0xff]
    %v50 = vld [vmem:[#allocation6] sm:$0xf]
    %v51 = vld [vmem:[#allocation6 + $0x4] sm:$0xf]
    %v52 = vld [vmem:[#allocation6 + $0x8] sm:$0xf]
    %v53 = vld [vmem:[#allocation6 + $0xc] sm:$0xf]
    %v58 = vunpack.c.l.b16 %v50
    %v59 = vunpack.c.l.b16 %v51
    %v60 = vunpack.c.l.b16 %v52
    %v61 = vunpack.c.l.b16 %v53
    %v62 = vpack.c.b16 %v59, %v58
    %v63 = vpack.c.b16 %v61, %v60
    %vm66 = vcmask 261120
    %v68 = vsel %vm66, %v48, 0
    %70 = vmatprep.subr.bf16.mxu0 0
    %71 = vmatpush1.bf16.msra.mxu0 %v62
    %72 = vmatprep.subr.bf16.mxu0 0
    %73 = vmatpush1.bf16.msra.mxu0 %v63
    %74 = vmatprep.subr.bf16.mxu0 0
    %75 = vmatpush1.bf16.msra.mxu0 0
    %76 = vmatprep.subr.bf16.mxu0 0
    %77 = vmatpush1.bf16.msra.mxu0 0
    %78 = vmatprep.subr.bf16.mxu0 0
    %79 = vmatpush1.bf16.msra.mxu0 0
    %80 = vmatprep.subr.bf16.mxu0 0
    %81 = vmatpush1.bf16.msra.mxu0 0
    %82 = vmatprep.subr.bf16.mxu0 0
    %83 = vmatpush1.bf16.msra.mxu0 0
    %84 = vmatprep.subr.bf16.mxu0 0
    %85 = vmatpush1.bf16.msra.mxu0 0
    %86 = vmatprep.subr.bf16.mxu0 0
    %87 = vmatpush1.bf16.msra.mxu0 0
    %88 = vmatprep.subr.bf16.mxu0 0
    %89 = vmatpush1.bf16.msra.mxu0 0
    %90 = vmatprep.subr.bf16.mxu0 0
    %91 = vmatpush1.bf16.msra.mxu0 0
    %92 = vmatprep.subr.bf16.mxu0 0
    %93 = vmatpush1.bf16.msra.mxu0 0
    %94 = vmatprep.subr.bf16.mxu0 0
    %95 = vmatpush1.bf16.msra.mxu0 0
    %96 = vmatprep.subr.bf16.mxu0 0
    %97 = vmatpush1.bf16.msra.mxu0 0
    %98 = vmatprep.subr.bf16.mxu0 0
    %99 = vmatpush1.bf16.msra.mxu0 0
    %100 = vmatprep.subr.bf16.mxu0 0
    %101 = vmatpush1.bf16.msra.mxu0 0
    %102 = vmatprep.mubr.bf16.mxu0 0
    %103 = vmatmul.mubr.bf16.gmra.mrb[0].mxu0 %v68
    %v104 = vpop.f32.mrb[0].mxu0
    %v105 = vadd.f32 0.0, %v104
    %v106 = vpop.f32.mrb[0].mxu0
    %v107 = vpop.f32.mrb[0].mxu0
    %v108 = vpop.f32.mrb[0].mxu0
    %109 = vdwg.mxu0
    %v110 = vadd.f32 %v49, %v105
    %111 = vst [vmem:[#allocation2] sm:$0xff] %v110
    // Predicated region
    $region26: #{tpu_custom_call.1} parent=1 // pred_check
      %p112 = pneg %p42
    $region27: #{tpu_custom_call.1} parent=1 // pred_check_branch
      %114 = sbr.rel (%p112) target = $region29
    $region28: #{tpu_custom_call.1} parent=1 // pred_region
      %v115 = vld [vmem:[#allocation2] sm:$0xff]
      %v116 = vld [vmem:[%s2] sm:$0x1]
      %v118 = vlaneseq
      %v119 = vshrl.u32 %v118, 7
      %v120 = vsub.s32 0, %v119
      %v121 = vrot.slane %v116, %v120
      %v123 = vadd.f32 %v115, %v121
      %124 = vst [vmem:[#allocation8] sm:$0xff] %v123
    $region29: #{tpu_custom_call.1} parent=1 // pred_fallthru
      _
    // Predicated region
    $region30: #{tpu_custom_call.1} parent=1 // pred_check
      _
    $region31: #{tpu_custom_call.1} parent=1 // pred_check_branch
      %126 = sbr.rel (0) target = $region33
    $region32: #{tpu_custom_call.1} parent=1 // pred_region
      %s128 = ssub.s32 128, 128
      %129 = vsyncadd [#allocation5], %s128
      %s131 = sshll.u32 [#allocation8], 4
      %s132 = int_to_ptr.vmem [resolvable:$true] %s131
      %134 = dma.vmem_to_hbm [thread:$0]  %s132, 128, %s3, [#allocation5]
    $region33: #{tpu_custom_call.1} parent=1 // pred_fallthru
      _
    // Predicated region
    $region34: #{tpu_custom_call.1} parent=1 // pred_check
      _
    $region35: #{tpu_custom_call.1} parent=1 // pred_check_branch
      %136 = sbr.rel (0) target = $region37
    $region36: #{tpu_custom_call.1} parent=1 // pred_region
      %137 = dma.done [#allocation5], 128
    $region37: #{tpu_custom_call.1} parent=1 // pred_fallthru
      _
    %138 = vsyncpa [#allocation4], 1
    %139 = vsyncpa [#allocation7], 1
    %140 = vsyncpa [#allocation5], 1

</llo_original>
